<compile_context>
chip_gen: v7x
topology: tpu7x:2x2x1
jax: 0.10.0
libtpu: 0.0.40
codegen_flags: <defaults>
</compile_context>

<pallas_src>
import math
from functools import partial

import jax
import jax.numpy as jnp
from jax.experimental import pallas as pl
from jax.experimental.pallas import tpu as pltpu


def _round_up(x, m):
    return ((x + m - 1) // m) * m


# ----------------------------------------------------------------------------
# Pallas kernels
# ----------------------------------------------------------------------------

def _matmul_kernel(a_ref, b_ref, o_ref, acc_ref):
    @pl.when(pl.program_id(2) == 0)
    def _():
        acc_ref[...] = jnp.zeros_like(acc_ref)

    acc_ref[...] += jnp.dot(a_ref[...], b_ref[...],
                            preferred_element_type=jnp.float32)

    @pl.when(pl.program_id(2) == pl.num_programs(2) - 1)
    def _():
        o_ref[...] = acc_ref[...].astype(o_ref.dtype)


def _matmul_bias_kernel(a_ref, b_ref, bias_ref, o_ref, acc_ref):
    @pl.when(pl.program_id(2) == 0)
    def _():
        acc_ref[...] = jnp.zeros_like(acc_ref)

    acc_ref[...] += jnp.dot(a_ref[...], b_ref[...],
                            preferred_element_type=jnp.float32)

    @pl.when(pl.program_id(2) == pl.num_programs(2) - 1)
    def _():
        o_ref[...] = (acc_ref[...] + bias_ref[...]).astype(o_ref.dtype)


def _matmul_call(a, b, bias):
    """a: (M, K), b: (K, N), optional bias (N,) -> f32 (M, N).

    bf16 MXU inputs, f32 accumulation, bias fused into the epilogue write.
    """
    M, K = a.shape
    K2, N = b.shape
    assert K == K2
    a = a.astype(jnp.bfloat16)
    b = b.astype(jnp.bfloat16)

    tm = min(256, _round_up(M, 8))
    tn = min(256, _round_up(N, 128))
    tk = min(512, _round_up(K, 128))
    Mp, Kp, Np = _round_up(M, tm), _round_up(K, tk), _round_up(N, tn)
    if (Mp, Kp) != (M, K):
        a = jnp.pad(a, ((0, Mp - M), (0, Kp - K)))
    if (Kp, Np) != (K, N):
        b = jnp.pad(b, ((0, Kp - K), (0, Np - N)))

    a_spec = pl.BlockSpec((tm, tk), lambda i, j, k: (i, k))
    b_spec = pl.BlockSpec((tk, tn), lambda i, j, k: (k, j))
    o_spec = pl.BlockSpec((tm, tn), lambda i, j, k: (i, j))

    if bias is not None:
        bias2 = bias.reshape(1, N).astype(jnp.float32)
        if Np != N:
            bias2 = jnp.pad(bias2, ((0, 0), (0, Np - N)))
        kernel = _matmul_bias_kernel
        in_specs = [a_spec, b_spec, pl.BlockSpec((1, tn), lambda i, j, k: (0, j))]
        args = (a, b, bias2)
    else:
        kernel = _matmul_kernel
        in_specs = [a_spec, b_spec]
        args = (a, b)

    out = pl.pallas_call(
        kernel,
        out_shape=jax.ShapeDtypeStruct((Mp, Np), jnp.float32),
        grid_spec=pltpu.PrefetchScalarGridSpec(
            num_scalar_prefetch=0,
            grid=(Mp // tm, Np // tn, Kp // tk),
            in_specs=in_specs,
            out_specs=o_spec,
            scratch_shapes=[pltpu.VMEM((tm, tn), jnp.float32)]),
        compiler_params=pltpu.CompilerParams(
            dimension_semantics=("parallel", "parallel", "arbitrary")),
    )(*args)
    if (Mp, Np) != (M, N):
        out = out[:M, :N]
    return out


@jax.jit
def _pallas_matmul_nobias(a, b):
    return _matmul_call(a, b, None)


@jax.jit
def _pallas_matmul_bias(a, b, bias):
    return _matmul_call(a, b, bias)


def pallas_matmul(a, b, bias=None):
    if bias is None:
        return _pallas_matmul_nobias(a, b)
    return _pallas_matmul_bias(a, b, bias)


def _softmax_kernel(x_ref, o_ref):
    x = x_ref[...]
    m = jnp.max(x, axis=-1, keepdims=True)
    e = jnp.exp(x - m)
    o_ref[...] = e / jnp.sum(e, axis=-1, keepdims=True)


@jax.jit
def pallas_softmax_lastdim(x):
    """Softmax over the last axis (any rank), row-blocked grid."""
    shape = x.shape
    x2 = x.reshape(-1, shape[-1]).astype(jnp.float32)
    R, C = x2.shape
    br = min(256, _round_up(R, 8))
    Rp = _round_up(R, br)
    if Rp != R:
        x2 = jnp.pad(x2, ((0, Rp - R), (0, 0)))
    out = pl.pallas_call(
        _softmax_kernel,
        out_shape=jax.ShapeDtypeStruct((Rp, C), jnp.float32),
        grid=(Rp // br,),
        in_specs=[pl.BlockSpec((br, C), lambda i: (i, 0))],
        out_specs=pl.BlockSpec((br, C), lambda i: (i, 0)),
        compiler_params=pltpu.CompilerParams(
            dimension_semantics=("parallel",)),
    )(x2)
    if Rp != R:
        out = out[:R]
    return out.reshape(shape)


def _layernorm_kernel(x_ref, g_ref, b_ref, o_ref):
    x = x_ref[...]
    mu = jnp.mean(x, axis=-1, keepdims=True)
    var = jnp.mean((x - mu) ** 2, axis=-1, keepdims=True)
    o_ref[...] = (x - mu) * jax.lax.rsqrt(var + 1e-5) * g_ref[...] + b_ref[...]


@jax.jit
def pallas_layernorm_lastdim(x, weight, bias):
    """LayerNorm over the last axis, gamma/beta folded into the kernel."""
    shape = x.shape
    C = shape[-1]
    x2 = x.reshape(-1, C).astype(jnp.float32)
    R = x2.shape[0]
    br = min(256, _round_up(R, 8))
    Rp = _round_up(R, br)
    if Rp != R:
        x2 = jnp.pad(x2, ((0, Rp - R), (0, 0)))
    out = pl.pallas_call(
        _layernorm_kernel,
        out_shape=jax.ShapeDtypeStruct((Rp, C), jnp.float32),
        grid=(Rp // br,),
        in_specs=[pl.BlockSpec((br, C), lambda i: (i, 0)),
                  pl.BlockSpec((1, C), lambda i: (0, 0)),
                  pl.BlockSpec((1, C), lambda i: (0, 0))],
        out_specs=pl.BlockSpec((br, C), lambda i: (i, 0)),
        compiler_params=pltpu.CompilerParams(
            dimension_semantics=("parallel",)),
    )(x2, weight.reshape(1, C).astype(jnp.float32),
      bias.reshape(1, C).astype(jnp.float32))
    if Rp != R:
        out = out[:R]
    return out.reshape(shape)


def _attn_kernel(q_ref, k_ref, v_ref, o_ref, *, scale):
    q = q_ref[0]                                     # (N, D) bf16
    k = k_ref[0]
    v = v_ref[0]
    s = jax.lax.dot_general(q, k, (((1,), (1,)), ((), ())),
                            preferred_element_type=jnp.float32) * scale
    m = jnp.max(s, axis=-1, keepdims=True)
    e = jnp.exp(s - m)
    p = e / jnp.sum(e, axis=-1, keepdims=True)
    o_ref[0] = jnp.dot(p.astype(v.dtype), v,
                       preferred_element_type=jnp.float32).astype(o_ref.dtype)


@partial(jax.jit, static_argnames=("scale", "out_dtype"))
def _pallas_attention_flat(q, k, v, scale, out_dtype):
    BH, N, D = q.shape
    return pl.pallas_call(
        partial(_attn_kernel, scale=scale),
        out_shape=jax.ShapeDtypeStruct((BH, N, D), out_dtype),
        grid=(BH,),
        in_specs=[pl.BlockSpec((1, N, D), lambda b: (b, 0, 0)),
                  pl.BlockSpec((1, N, D), lambda b: (b, 0, 0)),
                  pl.BlockSpec((1, N, D), lambda b: (b, 0, 0))],
        out_specs=pl.BlockSpec((1, N, D), lambda b: (b, 0, 0)),
        compiler_params=pltpu.CompilerParams(
            dimension_semantics=("parallel",)),
    )(q, k, v)


def pallas_attention(q, k, v, scale, out_dtype=jnp.float32):
    """Fused softmax(q @ k^T * scale) @ v.  q/k/v: (B, H, N, D) -> (B,H,N,D)."""
    B, H, N, D = q.shape
    qf = q.reshape(B * H, N, D).astype(jnp.bfloat16)
    kf = k.reshape(B * H, N, D).astype(jnp.bfloat16)
    vf = v.reshape(B * H, N, D).astype(jnp.bfloat16)
    out = _pallas_attention_flat(qf, kf, vf, float(scale), out_dtype)
    return out.reshape(B, H, N, D)


# ----------------------------------------------------------------------------
# NN building blocks (glue in JAX, GEMMs / reductions in Pallas)
# ----------------------------------------------------------------------------

def _im2col(x, kh, kw, stride, padding, dilation):
    """Build bf16 im2col matrix (B*Ho*Wo, Cin*kh*kw)."""
    B, Cin, H, W = x.shape
    s, p, d = stride, padding, dilation
    Ho = (H + 2 * p - d * (kh - 1) - 1) // s + 1
    Wo = (W + 2 * p - d * (kw - 1) - 1) // s + 1
    xb = x.astype(jnp.bfloat16)
    xp = jnp.pad(xb, ((0, 0), (0, 0), (p, p), (p, p)))
    cols = []
    for i in range(kh):
        for j in range(kw):
            hi, wj = i * d, j * d
            cols.append(xp[:, :, hi:hi + s * Ho:s, wj:wj + s * Wo:s])
    col = jnp.stack(cols, axis=2)                     # (B, Cin, kh*kw, Ho, Wo)
    col = col.reshape(B, Cin * kh * kw, Ho * Wo)
    col = col.transpose(0, 2, 1).reshape(B * Ho * Wo, Cin * kh * kw)
    return col, Ho, Wo


def _conv2d_rows(x, w, stride, padding, dilation, bias=None):
    """Dense (groups=1) NCHW conv via im2col + Pallas GEMM.

    Returns (out2d (B*Ho*Wo, Cout), B, Ho, Wo) — lane-dense channel-last rows.
    """
    B = x.shape[0]
    Cout, _, kh, kw = w.shape
    col, Ho, Wo = _im2col(x, kh, kw, stride, padding, dilation)
    wmat = w.reshape(Cout, -1).T.astype(jnp.bfloat16)
    out = pallas_matmul(col, wmat, bias=bias)         # (B*Ho*Wo, Cout) f32
    return out, B, Ho, Wo


def _rows_to_nchw(out2d, B, Ho, Wo, Cout):
    return out2d.reshape(B, Ho, Wo, Cout).transpose(0, 3, 1, 2)


@partial(jax.jit, static_argnames=("stride", "padding", "dilation"))
def conv2d(x, w, b=None, stride=1, padding=0, dilation=1):
    out, B, Ho, Wo = _conv2d_rows(x, w, stride, padding, dilation, bias=b)
    return _rows_to_nchw(out, B, Ho, Wo, w.shape[0])


@partial(jax.jit, static_argnames=("stride", "padding", "dilation", "relu"))
def conv_bn(x, w, bn, stride=1, padding=0, dilation=1, relu=False, eps=1e-5):
    """Conv (no bias) + training-mode BatchNorm (+optional ReLU), fused on the
    lane-dense (rows, Cout) GEMM output (single-pass statistics)."""
    out, B, Ho, Wo = _conv2d_rows(x, w, stride, padding, dilation)
    mean = jnp.mean(out, axis=0)
    ex2 = jnp.mean(out * out, axis=0)
    var = jnp.maximum(ex2 - mean * mean, 0.0)
    out = (out - mean[None, :]) * jax.lax.rsqrt(var + eps)[None, :]
    out = out * bn['gamma'][None, :] + bn['beta'][None, :]
    if relu:
        out = jnp.maximum(out, 0.0)
    return _rows_to_nchw(out, B, Ho, Wo, w.shape[0])


def depthwise_conv3x3_nhwc(x, w, b):
    """Depthwise 3x3 (stride 1, pad 1) in NHWC: 9 shifted lane-dense MACs."""
    B, H, W, C = x.shape
    xp = jnp.pad(x, ((0, 0), (1, 1), (1, 1), (0, 0)))
    out = jnp.zeros_like(x)
    for i in range(3):
        for j in range(3):
            out = out + xp[:, i:i + H, j:j + W, :] * w[:, 0, i, j][None, None, None, :]
    return out + b[None, None, None, :]


def max_pool2d(x, kernel, stride, padding):
    kh, kw = kernel if isinstance(kernel, tuple) else (kernel, kernel)
    sh, sw = stride if isinstance(stride, tuple) else (stride, stride)
    ph, pw = padding if isinstance(padding, tuple) else (padding, padding)
    B, C, H, W = x.shape
    Ho = (H + 2 * ph - kh) // sh + 1
    Wo = (W + 2 * pw - kw) // sw + 1
    xp = jnp.pad(x, ((0, 0), (0, 0), (ph, ph), (pw, pw)),
                 constant_values=-jnp.inf)
    out = jnp.full((B, C, Ho, Wo), -jnp.inf, x.dtype)
    for i in range(kh):
        for j in range(kw):
            out = jnp.maximum(out, xp[:, :, i:i + sh * Ho:sh, j:j + sw * Wo:sw])
    return out


def linear(x, w, b=None):
    """x: (..., in), w: (out, in) torch layout.  Bias fused in the GEMM epilogue."""
    shape = x.shape
    out = pallas_matmul(x.reshape(-1, shape[-1]), jnp.transpose(w), bias=b)
    return out.reshape(shape[:-1] + (w.shape[0],))


def upsample_nearest_x2(x):
    return jnp.repeat(jnp.repeat(x, 2, axis=2), 2, axis=3)


def upsample_bilinear(x, scale):
    """PyTorch bilinear, align_corners=False (half-pixel, clamp-to-0)."""
    B, C, H, W = x.shape
    Ho, Wo = H * scale, W * scale

    def idx_w(in_size, out_size):
        o = jnp.arange(out_size, dtype=jnp.float32)
        src = (o + 0.5) * (in_size / out_size) - 0.5
        src = jnp.maximum(src, 0.0)
        i0 = jnp.minimum(jnp.floor(src).astype(jnp.int32), in_size - 1)
        i1 = jnp.minimum(i0 + 1, in_size - 1)
        f = src - i0.astype(jnp.float32)
        return i0, i1, f

    h0, h1, fh = idx_w(H, Ho)
    w0, w1, fw = idx_w(W, Wo)
    top = (x[:, :, h0, :] * (1 - fh)[None, None, :, None]
           + x[:, :, h1, :] * fh[None, None, :, None])
    return (top[:, :, :, w0] * (1 - fw)[None, None, None, :]
            + top[:, :, :, w1] * fw[None, None, None, :])


# ----------------------------------------------------------------------------
# Parameter construction (deterministic, in-script)
# ----------------------------------------------------------------------------

class ParamGen:
    def __init__(self, seed=0):
        self.key = jax.random.PRNGKey(seed)
        self.count = 0

    def normal(self, shape, std):
        self.count += 1
        k = jax.random.fold_in(self.key, self.count)
        return std * jax.random.normal(k, shape, dtype=jnp.float32)


def make_conv(pg, cout, cin, k):
    return pg.normal((cout, cin, k, k), math.sqrt(2.0 / (k * k * cout)))


def make_bn(c):
    return {'gamma': jnp.ones((c,), jnp.float32), 'beta': jnp.zeros((c,), jnp.float32)}


def make_resnet18(pg):
    # TODO(synk): nets/resnet.py not provided; assume the customary change-detection
    # variant where BasicBlock applies its dilation to both 3x3 convs (padding=dilation).
    p = {'stem': {'conv1': make_conv(pg, 64, 3, 7), 'bn1': make_bn(64)}}
    state = {'inplanes': 64, 'dilation': 1}

    def make_layer(planes, blocks, stride, dilate):
        prev_dil = state['dilation']
        if dilate:
            state['dilation'] *= stride
            stride = 1
        layer = []
        inplanes = state['inplanes']
        blk = {'conv1': make_conv(pg, planes, inplanes, 3), 'bn1': make_bn(planes),
               'conv2': make_conv(pg, planes, planes, 3), 'bn2': make_bn(planes),
               'stride': stride, 'dilation': prev_dil}
        if stride != 1 or inplanes != planes:
            blk['down_conv'] = make_conv(pg, planes, inplanes, 1)
            blk['down_bn'] = make_bn(planes)
        layer.append(blk)
        state['inplanes'] = planes
        for _ in range(1, blocks):
            layer.append({'conv1': make_conv(pg, planes, planes, 3), 'bn1': make_bn(planes),
                          'conv2': make_conv(pg, planes, planes, 3), 'bn2': make_bn(planes),
                          'stride': 1, 'dilation': state['dilation']})
        return layer

    p['layer1'] = make_layer(64, 2, 1, False)
    p['layer2'] = make_layer(128, 2, 2, False)
    p['layer3'] = make_layer(256, 2, 2, True)
    p['layer4'] = make_layer(512, 2, 2, True)
    return p


def make_cgla(pg, dim, mlp_ratio=4.0):
    hid = int(dim * mlp_ratio)
    return {
        'norm1_g': jnp.ones((dim,)), 'norm1_b': jnp.zeros((dim,)),
        'norm2_g': jnp.ones((dim,)), 'norm2_b': jnp.zeros((dim,)),
        'attn': {
            'q_w': pg.normal((dim, dim), 0.02),
            'kv_w': pg.normal((2 * dim, dim), 0.02),
            'proj_w': pg.normal((dim, dim), 0.02),
            'proj_b': jnp.zeros((dim,)),
            'local1_conv': make_conv(pg, dim, dim, 1), 'local1_bn': make_bn(dim),
            'local2_conv': make_conv(pg, dim, dim, 3), 'local2_bn': make_bn(dim),
        },
        'mlp': {
            'fc1_w': pg.normal((hid, dim), 0.02), 'fc1_b': jnp.zeros((hid,)),
            'dw_w': pg.normal((hid, 1, 3, 3), math.sqrt(2.0 / 9.0)),
            'dw_b': jnp.zeros((hid,)),
            'fc2_w': pg.normal((dim, hid), 0.02), 'fc2_b': jnp.zeros((dim,)),
        },
    }


def make_decoder(pg, class_n=2):
    return {
        'conv_pred_w': make_conv(pg, 32, 512, 3), 'conv_pred_b': jnp.zeros((32,)),
        'cls_conv1_w': make_conv(pg, 64, 64, 3), 'cls_bn': make_bn(64),
        'cls_conv2_w': make_conv(pg, class_n, 64, 3), 'cls_conv2_b': jnp.zeros((class_n,)),
    }


# ----------------------------------------------------------------------------
# Forward pass
# ----------------------------------------------------------------------------

def basic_block_fwd(p, x):
    identity = x
    d = p['dilation']
    out = conv_bn(x, p['conv1'], p['bn1'], stride=p['stride'], padding=d,
                  dilation=d, relu=True)
    out = conv_bn(out, p['conv2'], p['bn2'], stride=1, padding=d,
                  dilation=d, relu=False)
    if 'down_conv' in p:
        identity = conv_bn(x, p['down_conv'], p['down_bn'],
                           stride=p['stride'], padding=0, relu=False)
    return jax.nn.relu(out + identity)


def resnet_layer_fwd(layer, x):
    for blk in layer:
        x = basic_block_fwd(blk, x)
    return x


def resnet_stem(p, x):
    x = conv_bn(x, p['conv1'], p['bn1'], stride=2, padding=3, relu=True)
    return max_pool2d(x, 3, 2, 1)


def local_attention_fwd(p, x1_seq, x2_seq, h, w):
    b, n, c = x1_seq.shape
    x1 = x1_seq.reshape(b, -1, h, w)     # raw reshape (matches torch)
    x2 = x2_seq.reshape(b, -1, h, w)

    def one(x):
        # BatchNorm is in training mode: per-stream stats, so keep streams separate.
        l1 = conv_bn(x, p['local1_conv'], p['local1_bn'], stride=1, padding=0)
        l2 = conv_bn(x, p['local2_conv'], p['local2_bn'], stride=1, padding=1)
        return (l1 + l2).reshape(b, -1, c)

    return one(x1), one(x2)


def cross_attention_fwd(p, x1, x2, h, w, num_heads):
    b, n, c = x1.shape
    hd = c // num_heads
    scale = hd ** (-0.5)

    # single fused qkv projection over both streams (x1 stacked with x2)
    x12 = jnp.concatenate([x1, x2], axis=0)                       # (2b, n, c)
    qkv_w = jnp.concatenate([p['q_w'], p['kv_w']], axis=0)        # (3c, c)
    qkv = linear(x12, qkv_w)                                      # (2b, n, 3c)
    q = qkv[..., :c].reshape(2 * b, n, num_heads, hd).transpose(0, 2, 1, 3)
    k = qkv[..., c:2 * c].reshape(2 * b, n, num_heads, hd).transpose(0, 2, 1, 3)
    v = qkv[..., 2 * c:].reshape(2 * b, n, num_heads, hd).transpose(0, 2, 1, 3)
    q1, q2 = q[:b], q[b:]
    k1, k2 = k[:b], k[b:]
    v1, v2 = v[:b], v[b:]

    # attn_1 uses (q2, k1, v1); attn_2 uses (q1, k2, v2) — batch them together
    qq = jnp.concatenate([q2, q1], axis=0)
    kk = jnp.concatenate([k1, k2], axis=0)
    vv = jnp.concatenate([v1, v2], axis=0)
    g = pallas_attention(qq, kk, vv, scale, out_dtype=jnp.bfloat16)  # (2b, H, n, hd)
    g = g.transpose(0, 2, 1, 3).reshape(2 * b, n, c)
    g = linear(g, p['proj_w'], p['proj_b'])
    g1, g2 = g[:b], g[b:]

    l1, l2 = local_attention_fwd(p, x1, x2, h, w)
    return g1 + l1, g2 + l2


def mlp_fwd(p, x, h, w):
    x = linear(x, p['fc1_w'], p['fc1_b'])
    B, N, C = x.shape
    xi = x.reshape(B, h, w, C)                      # NHWC (lane-dense channels)
    xi = depthwise_conv3x3_nhwc(xi, p['dw_w'], p['dw_b'])
    x = xi.reshape(B, N, C)
    x = jax.nn.gelu(x, approximate=False)
    return linear(x, p['fc2_w'], p['fc2_b'])


def cgla_block_fwd(p, x1_img, x2_img, num_heads):
    b, c, h, w = x1_img.shape
    x1 = x1_img.reshape(b, -1, c)   # raw reshape (not transpose), as in torch
    x2 = x2_img.reshape(b, -1, c)
    n1 = pallas_layernorm_lastdim(x1, p['norm1_g'], p['norm1_b'])
    n2 = pallas_layernorm_lastdim(x2, p['norm1_g'], p['norm1_b'])
    a1, a2 = cross_attention_fwd(p['attn'], n1, n2, h, w, num_heads)
    x1 = x1 + a1
    x2 = x2 + a2
    # MLP is shared and has no BatchNorm, so both streams run as one batch.
    x12 = jnp.concatenate([x1, x2], axis=0)
    n12 = pallas_layernorm_lastdim(x12, p['norm2_g'], p['norm2_b'])
    m12 = mlp_fwd(p['mlp'], n12, h, w)
    x1 = x1 + m12[:b]
    x2 = x2 + m12[b:]
    return x1.reshape(b, c, h, w), x2.reshape(b, c, h, w)


def encoder_fwd(p, x1, x2, num_heads=8):
    x1 = resnet_stem(p['resnet']['stem'], x1)
    x2 = resnet_stem(p['resnet']['stem'], x2)
    x1 = resnet_layer_fwd(p['resnet']['layer1'], x1)
    x2 = resnet_layer_fwd(p['resnet']['layer1'], x2)
    x1, x2 = cgla_block_fwd(p['ca'][0], x1, x2, num_heads)
    x1 = resnet_layer_fwd(p['resnet']['layer2'], x1)
    x2 = resnet_layer_fwd(p['resnet']['layer2'], x2)
    x1, x2 = cgla_block_fwd(p['ca'][1], x1, x2, num_heads)
    x1 = resnet_layer_fwd(p['resnet']['layer3'], x1)
    x2 = resnet_layer_fwd(p['resnet']['layer3'], x2)
    x1, x2 = cgla_block_fwd(p['ca'][2], x1, x2, num_heads)
    x1 = resnet_layer_fwd(p['resnet']['layer4'], x1)
    x2 = resnet_layer_fwd(p['resnet']['layer4'], x2)
    x1, x2 = cgla_block_fwd(p['ca'][3], x1, x2, num_heads)
    return x1, x2


def sfd_loss_fwd(x, class_num=2):
    b, c, h, w = x.shape
    occ = c // class_num                               # OneClassChannelNum
    branch = x.reshape(b, c, h * w)
    # softmax(branch @ branch^T) @ branch  == fused attention with scale=1
    branch = pallas_attention(branch[:, None], branch[:, None],
                              branch[:, None], 1.0)[:, 0]
    branch = pallas_softmax_lastdim(branch)
    branch = branch.reshape(b, h, w, c)                # raw reshape, as in torch
    branch = max_pool2d(branch, (1, occ), (1, occ), (0, 0))
    branch = branch.transpose(0, 3, 1, 2)
    branch = max_pool2d(branch, 3, 1, 1)
    branch = branch.reshape(b, branch.shape[1], -1)
    return 1.0 - jnp.mean(jnp.sum(branch, axis=2)) / occ


def decoder_fwd(p, x1, x2):
    b = x1.shape[0]
    # conv_pred has no BN -> both streams as one batched GEMM.
    x12 = jnp.concatenate([x1, x2], axis=0)
    x12 = upsample_nearest_x2(x12)
    x12 = conv2d(x12, p['conv_pred_w'], p['conv_pred_b'], stride=1, padding=1)
    x = jnp.concatenate([x12[:b], x12[b:]], axis=1)    # fusion policy 'concat'
    _sfd = sfd_loss_fwd(x)                             # computed & discarded, as in torch forward
    x = upsample_bilinear(x, 4)
    # TODO(synk): TwoLayerConv2d source not given; assume Conv3x3(no bias)+BN+ReLU+Conv3x3(bias).
    y = conv_bn(x, p['cls_conv1_w'], p['cls_bn'], stride=1, padding=1, relu=True)
    y = conv2d(y, p['cls_conv2_w'], p['cls_conv2_b'], stride=1, padding=1)
    return y                                           # output_sigmoid=False


def sfbin_forward(params, x1, x2):
    x1, x2 = encoder_fwd(params, x1, x2, num_heads=8)
    return decoder_fwd(params['decoder'], x1, x2)


# ----------------------------------------------------------------------------
# Main
# ----------------------------------------------------------------------------

if __name__ == "__main__":
    key = jax.random.PRNGKey(0)
    k1, k2 = jax.random.split(key)
    B, H, W = 1, 32, 32                                # small but shape-consistent
    x1 = jax.random.normal(k1, (B, 3, H, W), jnp.float32)
    x2 = jax.random.normal(k2, (B, 3, H, W), jnp.float32)

    pg = ParamGen(42)
    params = {
        'resnet': make_resnet18(pg),
        'ca': [make_cgla(pg, d) for d in (64, 128, 256, 512)],
        'decoder': make_decoder(pg, class_n=2),
    }

    out = sfbin_forward(params, x1, x2)
    out = jax.block_until_ready(out)
    assert out.shape == (B, 2, H, W), out.shape
    assert bool(jnp.all(jnp.isfinite(out)))
    print("KERNEL_OK")
</pallas_src>

<mosaic_0001>
module attributes {stable_mosaic.version = 11 : i64} {
  func.func @_matmul_kernel(%arg0: i32, %arg1: i32, %arg2: i32, %arg3: memref<256x256xbf16, #tpu.memory_space<vmem>>, %arg4: memref<256x128xbf16, #tpu.memory_space<vmem>>, %arg5: memref<256x128xf32, #tpu.memory_space<vmem>>, %arg6: memref<256x128xf32, #tpu.memory_space<vmem>>) attributes {dimension_semantics = [#tpu.dimension_semantics<parallel>, #tpu.dimension_semantics<parallel>, #tpu.dimension_semantics<arbitrary>], iteration_bounds = array<i64: 1, 1, 1>, scalar_prefetch = 0 : i64, scratch_operands = 1 : i64, tpu.core_type = #tpu.core_type<tc>, window_params = [{transform_indices = @transform_0, window_bounds = array<i64: 256, 256>}, {transform_indices = @transform_1, window_bounds = array<i64: 256, 128>}, {transform_indices = @transform_2, window_bounds = array<i64: 256, 128>}]} {
    %c0_i32 = arith.constant 0 : i32
    %0 = arith.cmpi eq, %arg2, %c0_i32 : i32
    %1 = arith.extui %0 : i1 to i32
    %c0_i32_0 = arith.constant 0 : i32
    %2 = arith.cmpi ne, %1, %c0_i32_0 : i32
    scf.if %2 {
      %cst_10 = arith.constant 0.000000e+00 : f32
      %12 = vector.broadcast %cst_10 : f32 to vector<256x128xf32>
      %c0_11 = arith.constant 0 : index
      %c0_12 = arith.constant 0 : index
      %13 = vector.load %arg6[%c0_11, %c0_12] : memref<256x128xf32, #tpu.memory_space<vmem>>, vector<256x128xf32>
      tpu.vector_store %arg6[%c0_11, %c0_12], %12 {strides = array<i32>} : memref<256x128xf32, #tpu.memory_space<vmem>>, vector<256x128xf32>,
    } else {
    }
    %c0 = arith.constant 0 : index
    %c0_1 = arith.constant 0 : index
    %3 = vector.load %arg6[%c0, %c0_1] : memref<256x128xf32, #tpu.memory_space<vmem>>, vector<256x128xf32>
    %c0_2 = arith.constant 0 : index
    %c0_3 = arith.constant 0 : index
    %4 = vector.load %arg3[%c0_2, %c0_3] : memref<256x256xbf16, #tpu.memory_space<vmem>>, vector<256x256xbf16>
    %c0_4 = arith.constant 0 : index
    %c0_5 = arith.constant 0 : index
    %5 = vector.load %arg4[%c0_4, %c0_5] : memref<256x128xbf16, #tpu.memory_space<vmem>>, vector<256x128xbf16>
    %cst = arith.constant dense<0.000000e+00> : vector<256x128xf32>
    %6 = tpu.matmul %4, %5, %cst {dimension_numbers = #tpu.dot_dimension_numbers<[1], [0], [0], [1], [0, 0, 1, 1], [], []>} : vector<256x256xbf16>, vector<256x128xbf16>, vector<256x128xf32> -> vector<256x128xf32>
    %7 = arith.addf %3, %6 : vector<256x128xf32>
    %c0_6 = arith.constant 0 : index
    %c0_7 = arith.constant 0 : index
    %8 = vector.load %arg6[%c0_6, %c0_7] : memref<256x128xf32, #tpu.memory_space<vmem>>, vector<256x128xf32>
    tpu.vector_store %arg6[%c0_6, %c0_7], %7 {strides = array<i32>} : memref<256x128xf32, #tpu.memory_space<vmem>>, vector<256x128xf32>,
    %c0_i32_8 = arith.constant 0 : i32
    %9 = arith.cmpi eq, %arg2, %c0_i32_8 : i32
    %10 = arith.extui %9 : i1 to i32
    %c0_i32_9 = arith.constant 0 : i32
    %11 = arith.cmpi ne, %10, %c0_i32_9 : i32
    scf.if %11 {
      %c0_10 = arith.constant 0 : index
      %c0_11 = arith.constant 0 : index
      %12 = vector.load %arg6[%c0_10, %c0_11] : memref<256x128xf32, #tpu.memory_space<vmem>>, vector<256x128xf32>
      %c0_12 = arith.constant 0 : index
      %c0_13 = arith.constant 0 : index
      %13 = vector.load %arg5[%c0_12, %c0_13] : memref<256x128xf32, #tpu.memory_space<vmem>>, vector<256x128xf32>
      tpu.vector_store %arg5[%c0_12, %c0_13], %12 {strides = array<i32>} : memref<256x128xf32, #tpu.memory_space<vmem>>, vector<256x128xf32>,
    } else {
    }
    return
  }
  func.func @transform_0(%arg0: i32, %arg1: i32, %arg2: i32) -> (i32, i32) {
    %c0_i32 = arith.constant 0 : i32
    return %arg0, %arg2 : i32, i32
  }
  func.func @transform_1(%arg0: i32, %arg1: i32, %arg2: i32) -> (i32, i32) {
    %c0_i32 = arith.constant 0 : i32
    return %arg2, %arg1 : i32, i32
  }
  func.func @transform_2(%arg0: i32, %arg1: i32, %arg2: i32) -> (i32, i32) {
    %c0_i32 = arith.constant 0 : i32
    return %arg0, %arg1 : i32, i32
  }
}

</mosaic_0001>

<llo_original>
// kernel: _pallas_matmul_nobias.1
$region0: #{_pallas_matmul_nobias.1}
  #allocation0 [shape = 'u32[]', space=smem, size = 0x4, offset = 0x4, fixed_abs, tag = 'smem constant byte address 0x4 - core index']
  #allocation1 [shape = 'u32[144,128]{1,0:T(1,128)}', space=vmem, size = 0x12000, scoped, tag = 'internal scratch']
  #allocation2 [shape = 'f32[256,128]{1,0:T(8,128)}', space=vmem, size = 0x20000, scoped, tag = 'scratch operand']
  %s0 = inlined_call_operand.vmem [shape: bf16[256,256], index: 0, kind: input, shape index: {}]
  %s1 = inlined_call_operand.vmem [shape: bf16[256,128], index: 1, kind: input, shape index: {}]
  %s2 = inlined_call_operand.vmem [shape: f32[256,128], index: 2, kind: output, shape index: {}]
  %s3 = sld [smem:[#allocation0]]
  $region26: #{_pallas_matmul_nobias.1} parent=0
    _
  %s5 = ssub.s32 1, %s3
  %s6 = scalar_select 0, %s5, %s3
  // Predicated region
  $region2: #{_pallas_matmul_nobias.1} parent=0 // pred_check
    _
  $region3: #{_pallas_matmul_nobias.1} parent=0 // pred_check_branch
    %8 = sbr.rel (0) target = $region5
  $region4: #{_pallas_matmul_nobias.1} parent=0 // pred_region
    _
  $region5: #{_pallas_matmul_nobias.1} parent=0 // pred_fallthru
    _
  // Predicated region
  $region6: #{_pallas_matmul_nobias.1} parent=0 // pred_check
    _
  $region7: #{_pallas_matmul_nobias.1} parent=0 // pred_check_branch
    %10 = sbr.rel (0) target = $region9
  $region8: #{_pallas_matmul_nobias.1} parent=0 // pred_region
    _
  $region9: #{_pallas_matmul_nobias.1} parent=0 // pred_fallthru
    _
  %p12 = scmp.eq.s32.totalorder 0, 0
  // Predicated region
  $region10: #{_pallas_matmul_nobias.1} parent=0 // pred_check
    %p13 = pneg %p12
  $region11: #{_pallas_matmul_nobias.1} parent=0 // pred_check_branch
    %15 = sbr.rel (%p13) target = $region13
  $region12: #{_pallas_matmul_nobias.1} parent=0 // pred_region
    %16 = vst [vmem:[#allocation2] sm:$0xff] 0.0
    %17 = vst [vmem:[#allocation2 + $0x8] sm:$0xff] 0.0
    %18 = vst [vmem:[#allocation2 + $0x10] sm:$0xff] 0.0
    %19 = vst [vmem:[#allocation2 + $0x18] sm:$0xff] 0.0
    %20 = vst [vmem:[#allocation2 + $0x20] sm:$0xff] 0.0
    %21 = vst [vmem:[#allocation2 + $0x28] sm:$0xff] 0.0
    %22 = vst [vmem:[#allocation2 + $0x30] sm:$0xff] 0.0
    %23 = vst [vmem:[#allocation2 + $0x38] sm:$0xff] 0.0
    %24 = vst [vmem:[#allocation2 + $0x40] sm:$0xff] 0.0
    %25 = vst [vmem:[#allocation2 + $0x48] sm:$0xff] 0.0
    %26 = vst [vmem:[#allocation2 + $0x50] sm:$0xff] 0.0
    %27 = vst [vmem:[#allocation2 + $0x58] sm:$0xff] 0.0
    %28 = vst [vmem:[#allocation2 + $0x60] sm:$0xff] 0.0
    %29 = vst [vmem:[#allocation2 + $0x68] sm:$0xff] 0.0
    %30 = vst [vmem:[#allocation2 + $0x70] sm:$0xff] 0.0
    %31 = vst [vmem:[#allocation2 + $0x78] sm:$0xff] 0.0
    %32 = vst [vmem:[#allocation2 + $0x80] sm:$0xff] 0.0
    %33 = vst [vmem:[#allocation2 + $0x88] sm:$0xff] 0.0
    %34 = vst [vmem:[#allocation2 + $0x90] sm:$0xff] 0.0
    %35 = vst [vmem:[#allocation2 + $0x98] sm:$0xff] 0.0
    %36 = vst [vmem:[#allocation2 + $0xa0] sm:$0xff] 0.0
    %37 = vst [vmem:[#allocation2 + $0xa8] sm:$0xff] 0.0
    %38 = vst [vmem:[#allocation2 + $0xb0] sm:$0xff] 0.0
    %39 = vst [vmem:[#allocation2 + $0xb8] sm:$0xff] 0.0
    %40 = vst [vmem:[#allocation2 + $0xc0] sm:$0xff] 0.0
    %41 = vst [vmem:[#allocation2 + $0xc8] sm:$0xff] 0.0
    %42 = vst [vmem:[#allocation2 + $0xd0] sm:$0xff] 0.0
    %43 = vst [vmem:[#allocation2 + $0xd8] sm:$0xff] 0.0
    %44 = vst [vmem:[#allocation2 + $0xe0] sm:$0xff] 0.0
    %45 = vst [vmem:[#allocation2 + $0xe8] sm:$0xff] 0.0
    %46 = vst [vmem:[#allocation2 + $0xf0] sm:$0xff] 0.0
    %47 = vst [vmem:[#allocation2 + $0xf8] sm:$0xff] 0.0
  $region13: #{_pallas_matmul_nobias.1} parent=0 // pred_fallthru
    _
  %v48 = vld [vmem:[#allocation2] sm:$0xff]
  %v49 = vld [vmem:[#allocation2 + $0x8] sm:$0xff]
  %v50 = vld [vmem:[#allocation2 + $0x10] sm:$0xff]
  %v51 = vld [vmem:[#allocation2 + $0x18] sm:$0xff]
  %v52 = vld [vmem:[#allocation2 + $0x20] sm:$0xff]
  %v53 = vld [vmem:[#allocation2 + $0x28] sm:$0xff]
  %v54 = vld [vmem:[#allocation2 + $0x30] sm:$0xff]
  %v55 = vld [vmem:[#allocation2 + $0x38] sm:$0xff]
  %v56 = vld [vmem:[#allocation2 + $0x40] sm:$0xff]
  %v57 = vld [vmem:[#allocation2 + $0x48] sm:$0xff]
  %v58 = vld [vmem:[#allocation2 + $0x50] sm:$0xff]
  %v59 = vld [vmem:[#allocation2 + $0x58] sm:$0xff]
  %v60 = vld [vmem:[#allocation2 + $0x60] sm:$0xff]
  %v61 = vld [vmem:[#allocation2 + $0x68] sm:$0xff]
  %v62 = vld [vmem:[#allocation2 + $0x70] sm:$0xff]
  %v63 = vld [vmem:[#allocation2 + $0x78] sm:$0xff]
  %v64 = vld [vmem:[#allocation2 + $0x80] sm:$0xff]
  %v65 = vld [vmem:[#allocation2 + $0x88] sm:$0xff]
  %v66 = vld [vmem:[#allocation2 + $0x90] sm:$0xff]
  %v67 = vld [vmem:[#allocation2 + $0x98] sm:$0xff]
  %v68 = vld [vmem:[#allocation2 + $0xa0] sm:$0xff]
  %v69 = vld [vmem:[#allocation2 + $0xa8] sm:$0xff]
  %v70 = vld [vmem:[#allocation2 + $0xb0] sm:$0xff]
  %v71 = vld [vmem:[#allocation2 + $0xb8] sm:$0xff]
  %v72 = vld [vmem:[#allocation2 + $0xc0] sm:$0xff]
  %v73 = vld [vmem:[#allocation2 + $0xc8] sm:$0xff]
  %v74 = vld [vmem:[#allocation2 + $0xd0] sm:$0xff]
  %v75 = vld [vmem:[#allocation2 + $0xd8] sm:$0xff]
  %v76 = vld [vmem:[#allocation2 + $0xe0] sm:$0xff]
  %v77 = vld [vmem:[#allocation2 + $0xe8] sm:$0xff]
  %v78 = vld [vmem:[#allocation2 + $0xf0] sm:$0xff]
  %v79 = vld [vmem:[#allocation2 + $0xf8] sm:$0xff]
  %v80 = vld [vmem:[%s0] sm:$0xff]
  %v81 = vld [vmem:[%s0 + $0x8] sm:$0xff]
  %v82 = vld [vmem:[%s0 + $0x10] sm:$0xff]
  %v83 = vld [vmem:[%s0 + $0x18] sm:$0xff]
  %v84 = vld [vmem:[%s0 + $0x20] sm:$0xff]
  %v85 = vld [vmem:[%s0 + $0x28] sm:$0xff]
  %v86 = vld [vmem:[%s0 + $0x30] sm:$0xff]
  %v87 = vld [vmem:[%s0 + $0x38] sm:$0xff]
  %v88 = vld [vmem:[%s0 + $0x40] sm:$0xff]
  %v89 = vld [vmem:[%s0 + $0x48] sm:$0xff]
  %v90 = vld [vmem:[%s0 + $0x50] sm:$0xff]
  %v91 = vld [vmem:[%s0 + $0x58] sm:$0xff]
  %v92 = vld [vmem:[%s0 + $0x60] sm:$0xff]
  %v93 = vld [vmem:[%s0 + $0x68] sm:$0xff]
  %v94 = vld [vmem:[%s0 + $0x70] sm:$0xff]
  %v95 = vld [vmem:[%s0 + $0x78] sm:$0xff]
  %v96 = vld [vmem:[%s0 + $0x80] sm:$0xff]
  %v97 = vld [vmem:[%s0 + $0x88] sm:$0xff]
  %v98 = vld [vmem:[%s0 + $0x90] sm:$0xff]
  %v99 = vld [vmem:[%s0 + $0x98] sm:$0xff]
  %v100 = vld [vmem:[%s0 + $0xa0] sm:$0xff]
  %v101 = vld [vmem:[%s0 + $0xa8] sm:$0xff]
  %v102 = vld [vmem:[%s0 + $0xb0] sm:$0xff]
  %v103 = vld [vmem:[%s0 + $0xb8] sm:$0xff]
  %v104 = vld [vmem:[%s0 + $0xc0] sm:$0xff]
  %v105 = vld [vmem:[%s0 + $0xc8] sm:$0xff]
  %v106 = vld [vmem:[%s0 + $0xd0] sm:$0xff]
  %v107 = vld [vmem:[%s0 + $0xd8] sm:$0xff]
  %v108 = vld [vmem:[%s0 + $0xe0] sm:$0xff]
  %v109 = vld [vmem:[%s0 + $0xe8] sm:$0xff]
  %v110 = vld [vmem:[%s0 + $0xf0] sm:$0xff]
  %v111 = vld [vmem:[%s0 + $0xf8] sm:$0xff]
  %v112 = vld [vmem:[%s1] sm:$0xf]
  %v113 = vld [vmem:[%s1 + $0x4] sm:$0xf]
  %v114 = vld [vmem:[%s1 + $0x8] sm:$0xf]
  %v115 = vld [vmem:[%s1 + $0xc] sm:$0xf]
  %v116 = vld [vmem:[%s1 + $0x10] sm:$0xf]
  %v117 = vld [vmem:[%s1 + $0x14] sm:$0xf]
  %v118 = vld [vmem:[%s1 + $0x18] sm:$0xf]
  %v119 = vld [vmem:[%s1 + $0x1c] sm:$0xf]
  %v120 = vld [vmem:[%s1 + $0x20] sm:$0xf]
  %v121 = vld [vmem:[%s1 + $0x24] sm:$0xf]
  %v122 = vld [vmem:[%s1 + $0x28] sm:$0xf]
  %v123 = vld [vmem:[%s1 + $0x2c] sm:$0xf]
  %v124 = vld [vmem:[%s1 + $0x30] sm:$0xf]
  %v125 = vld [vmem:[%s1 + $0x34] sm:$0xf]
  %v126 = vld [vmem:[%s1 + $0x38] sm:$0xf]
  %v127 = vld [vmem:[%s1 + $0x3c] sm:$0xf]
  %v128 = vld [vmem:[%s1 + $0x40] sm:$0xf]
  %v129 = vld [vmem:[%s1 + $0x44] sm:$0xf]
  %v130 = vld [vmem:[%s1 + $0x48] sm:$0xf]
  %v131 = vld [vmem:[%s1 + $0x4c] sm:$0xf]
  %v132 = vld [vmem:[%s1 + $0x50] sm:$0xf]
  %v133 = vld [vmem:[%s1 + $0x54] sm:$0xf]
  %v134 = vld [vmem:[%s1 + $0x58] sm:$0xf]
  %v135 = vld [vmem:[%s1 + $0x5c] sm:$0xf]
  %v136 = vld [vmem:[%s1 + $0x60] sm:$0xf]
  %v137 = vld [vmem:[%s1 + $0x64] sm:$0xf]
  %v138 = vld [vmem:[%s1 + $0x68] sm:$0xf]
  %v139 = vld [vmem:[%s1 + $0x6c] sm:$0xf]
  %v140 = vld [vmem:[%s1 + $0x70] sm:$0xf]
  %v141 = vld [vmem:[%s1 + $0x74] sm:$0xf]
  %v142 = vld [vmem:[%s1 + $0x78] sm:$0xf]
  %v143 = vld [vmem:[%s1 + $0x7c] sm:$0xf]
  %v176 = vunpack.c.l.b16 %v80
  %v177 = vunpack.c.h.b16 %v80
  %v178 = vunpack.c.l.b16 %v81
  %v179 = vunpack.c.h.b16 %v81
  %v180 = vunpack.c.l.b16 %v82
  %v181 = vunpack.c.h.b16 %v82
  %v182 = vunpack.c.l.b16 %v83
  %v183 = vunpack.c.h.b16 %v83
  %v184 = vunpack.c.l.b16 %v84
  %v185 = vunpack.c.h.b16 %v84
  %v186 = vunpack.c.l.b16 %v85
  %v187 = vunpack.c.h.b16 %v85
  %v188 = vunpack.c.l.b16 %v86
  %v189 = vunpack.c.h.b16 %v86
  %v190 = vunpack.c.l.b16 %v87
  %v191 = vunpack.c.h.b16 %v87
  %v192 = vunpack.c.l.b16 %v88
  %v193 = vunpack.c.h.b16 %v88
  %v194 = vunpack.c.l.b16 %v89
  %v195 = vunpack.c.h.b16 %v89
  %v196 = vunpack.c.l.b16 %v90
  %v197 = vunpack.c.h.b16 %v90
  %v198 = vunpack.c.l.b16 %v91
  %v199 = vunpack.c.h.b16 %v91
  %v200 = vunpack.c.l.b16 %v92
  %v201 = vunpack.c.h.b16 %v92
  %v202 = vunpack.c.l.b16 %v93
  %v203 = vunpack.c.h.b16 %v93
  %v204 = vunpack.c.l.b16 %v94
  %v205 = vunpack.c.h.b16 %v94
  %v206 = vunpack.c.l.b16 %v95
  %v207 = vunpack.c.h.b16 %v95
  %v208 = vunpack.c.l.b16 %v96
  %v209 = vunpack.c.h.b16 %v96
  %v210 = vunpack.c.l.b16 %v97
  %v211 = vunpack.c.h.b16 %v97
  %v212 = vunpack.c.l.b16 %v98
  %v213 = vunpack.c.h.b16 %v98
  %v214 = vunpack.c.l.b16 %v99
  %v215 = vunpack.c.h.b16 %v99
  %v216 = vunpack.c.l.b16 %v100
  %v217 = vunpack.c.h.b16 %v100
  %v218 = vunpack.c.l.b16 %v101
  %v219 = vunpack.c.h.b16 %v101
  %v220 = vunpack.c.l.b16 %v102
  %v221 = vunpack.c.h.b16 %v102
  %v222 = vunpack.c.l.b16 %v103
  %v223 = vunpack.c.h.b16 %v103
  %v224 = vunpack.c.l.b16 %v104
  %v225 = vunpack.c.h.b16 %v104
  %v226 = vunpack.c.l.b16 %v105
  %v227 = vunpack.c.h.b16 %v105
  %v228 = vunpack.c.l.b16 %v106
  %v229 = vunpack.c.h.b16 %v106
  %v230 = vunpack.c.l.b16 %v107
  %v231 = vunpack.c.h.b16 %v107
  %v232 = vunpack.c.l.b16 %v108
  %v233 = vunpack.c.h.b16 %v108
  %v234 = vunpack.c.l.b16 %v109
  %v235 = vunpack.c.h.b16 %v109
  %v236 = vunpack.c.l.b16 %v110
  %v237 = vunpack.c.h.b16 %v110
  %v238 = vunpack.c.l.b16 %v111
  %v239 = vunpack.c.h.b16 %v111
  %v240 = vpack.c.b16 %v178, %v176
  %v241 = vpack.c.b16 %v179, %v177
  %v242 = vpack.c.b16 %v182, %v180
  %v243 = vpack.c.b16 %v183, %v181
  %v244 = vpack.c.b16 %v186, %v184
  %v245 = vpack.c.b16 %v187, %v185
  %v246 = vpack.c.b16 %v190, %v188
  %v247 = vpack.c.b16 %v191, %v189
  %v248 = vpack.c.b16 %v194, %v192
  %v249 = vpack.c.b16 %v195, %v193
  %v250 = vpack.c.b16 %v198, %v196
  %v251 = vpack.c.b16 %v199, %v197
  %v252 = vpack.c.b16 %v202, %v200
  %v253 = vpack.c.b16 %v203, %v201
  %v254 = vpack.c.b16 %v206, %v204
  %v255 = vpack.c.b16 %v207, %v205
  %v256 = vpack.c.b16 %v210, %v208
  %v257 = vpack.c.b16 %v211, %v209
  %v258 = vpack.c.b16 %v214, %v212
  %v259 = vpack.c.b16 %v215, %v213
  %v260 = vpack.c.b16 %v218, %v216
  %v261 = vpack.c.b16 %v219, %v217
  %v262 = vpack.c.b16 %v222, %v220
  %v263 = vpack.c.b16 %v223, %v221
  %v264 = vpack.c.b16 %v226, %v224
  %v265 = vpack.c.b16 %v227, %v225
  %v266 = vpack.c.b16 %v230, %v228
  %v267 = vpack.c.b16 %v231, %v229
  %v268 = vpack.c.b16 %v234, %v232
  %v269 = vpack.c.b16 %v235, %v233
  %v270 = vpack.c.b16 %v238, %v236
  %v271 = vpack.c.b16 %v239, %v237
  %v336 = vunpack.c.l.b16 %v112
  %v337 = vunpack.c.l.b16 %v113
  %v338 = vunpack.c.l.b16 %v114
  %v339 = vunpack.c.l.b16 %v115
  %v340 = vunpack.c.l.b16 %v116
  %v341 = vunpack.c.l.b16 %v117
  %v342 = vunpack.c.l.b16 %v118
  %v343 = vunpack.c.l.b16 %v119
  %v344 = vunpack.c.l.b16 %v120
  %v345 = vunpack.c.l.b16 %v121
  %v346 = vunpack.c.l.b16 %v122
  %v347 = vunpack.c.l.b16 %v123
  %v348 = vunpack.c.l.b16 %v124
  %v349 = vunpack.c.l.b16 %v125
  %v350 = vunpack.c.l.b16 %v126
  %v351 = vunpack.c.l.b16 %v127
  %v352 = vunpack.c.l.b16 %v128
  %v353 = vunpack.c.l.b16 %v129
  %v354 = vunpack.c.l.b16 %v130
  %v355 = vunpack.c.l.b16 %v131
  %v356 = vunpack.c.l.b16 %v132
  %v357 = vunpack.c.l.b16 %v133
  %v358 = vunpack.c.l.b16 %v134
  %v359 = vunpack.c.l.b16 %v135
  %v360 = vunpack.c.l.b16 %v136
  %v361 = vunpack.c.l.b16 %v137
  %v362 = vunpack.c.l.b16 %v138
  %v363 = vunpack.c.l.b16 %v139
  %v364 = vunpack.c.l.b16 %v140
  %v365 = vunpack.c.l.b16 %v141
  %v366 = vunpack.c.l.b16 %v142
  %v367 = vunpack.c.l.b16 %v143
  %v368 = vpack.c.b16 %v337, %v336
  %v369 = vpack.c.b16 %v339, %v338
  %v370 = vpack.c.b16 %v341, %v340
  %v371 = vpack.c.b16 %v343, %v342
  %v372 = vpack.c.b16 %v345, %v344
  %v373 = vpack.c.b16 %v347, %v346
  %v374 = vpack.c.b16 %v349, %v348
  %v375 = vpack.c.b16 %v351, %v350
  %v376 = vpack.c.b16 %v353, %v352
  %v377 = vpack.c.b16 %v355, %v354
  %v378 = vpack.c.b16 %v357, %v356
  %v379 = vpack.c.b16 %v359, %v358
  %v380 = vpack.c.b16 %v361, %v360
  %v381 = vpack.c.b16 %v363, %v362
  %v382 = vpack.c.b16 %v365, %v364
  %v383 = vpack.c.b16 %v367, %v366
  %400 = vmatprep.subr.bf16.mxu0 0
  %401 = vmatpush1.bf16.msra.mxu0 %v368
  %402 = vmatprep.subr.bf16.mxu0 0
  %403 = vmatpush1.bf16.msra.mxu0 %v369
  %404 = vmatprep.subr.bf16.mxu0 0
  %405 = vmatpush1.bf16.msra.mxu0 %v370
  %406 = vmatprep.subr.bf16.mxu0 0
  %407 = vmatpush1.bf16.msra.mxu0 %v371
  %408 = vmatprep.subr.bf16.mxu0 0
  %409 = vmatpush1.bf16.msra.mxu0 %v372
  %410 = vmatprep.subr.bf16.mxu0 0
  %411 = vmatpush1.bf16.msra.mxu0 %v373
  %412 = vmatprep.subr.bf16.mxu0 0
  %413 = vmatpush1.bf16.msra.mxu0 %v374
  %414 = vmatprep.subr.bf16.mxu0 0
  %415 = vmatpush1.bf16.msra.mxu0 %v375
  %416 = vmatprep.subr.bf16.mxu0 0
  %417 = vmatpush1.bf16.msra.mxu0 %v376
  %418 = vmatprep.subr.bf16.mxu0 0
  %419 = vmatpush1.bf16.msra.mxu0 %v377
  %420 = vmatprep.subr.bf16.mxu0 0
  %421 = vmatpush1.bf16.msra.mxu0 %v378
  %422 = vmatprep.subr.bf16.mxu0 0
  %423 = vmatpush1.bf16.msra.mxu0 %v379
  %424 = vmatprep.subr.bf16.mxu0 0
  %425 = vmatpush1.bf16.msra.mxu0 %v380
  %426 = vmatprep.subr.bf16.mxu0 0
  %427 = vmatpush1.bf16.msra.mxu0 %v381
  %428 = vmatprep.subr.bf16.mxu0 0
  %429 = vmatpush1.bf16.msra.mxu0 %v382
  %430 = vmatprep.subr.bf16.mxu0 0
  %431 = vmatpush1.bf16.msra.mxu0 %v383
  %432 = vmatprep.mubr.bf16.mxu0 %v241
  %433 = vmatmul.mubr.bf16.gmra.mrb[0].mxu0 %v240
  %v434 = vpop.f32.mrb[0].mxu0
  %v435 = vadd.f32 0.0, %v434
  %v436 = vpop.f32.mrb[0].mxu0
  %v437 = vpop.f32.mrb[0].mxu0
  %v438 = vadd.f32 0.0, %v437
  %v439 = vpop.f32.mrb[0].mxu0
  %440 = vmatprep.mubr.bf16.mxu0 %v243
  %441 = vmatmul.mubr.bf16.gmra.mrb[0].mxu0 %v242
  %v442 = vpop.f32.mrb[0].mxu0
  %v443 = vadd.f32 0.0, %v442
  %v444 = vpop.f32.mrb[0].mxu0
  %v445 = vpop.f32.mrb[0].mxu0
  %v446 = vadd.f32 0.0, %v445
  %v447 = vpop.f32.mrb[0].mxu0
  %448 = vmatprep.mubr.bf16.mxu0 %v245
  %449 = vmatmul.mubr.bf16.gmra.mrb[0].mxu0 %v244
  %v450 = vpop.f32.mrb[0].mxu0
  %v451 = vadd.f32 0.0, %v450
  %v452 = vpop.f32.mrb[0].mxu0
  %v453 = vpop.f32.mrb[0].mxu0
  %v454 = vadd.f32 0.0, %v453
  %v455 = vpop.f32.mrb[0].mxu0
  %456 = vmatprep.mubr.bf16.mxu0 %v247
  %457 = vmatmul.mubr.bf16.gmra.mrb[0].mxu0 %v246
  %v458 = vpop.f32.mrb[0].mxu0
  %v459 = vadd.f32 0.0, %v458
  %v460 = vpop.f32.mrb[0].mxu0
  %v461 = vpop.f32.mrb[0].mxu0
  %v462 = vadd.f32 0.0, %v461
  %v463 = vpop.f32.mrb[0].mxu0
  %464 = vmatprep.mubr.bf16.mxu0 %v249
  %465 = vmatmul.mubr.bf16.gmra.mrb[0].mxu0 %v248
  %v466 = vpop.f32.mrb[0].mxu0
  %v467 = vadd.f32 0.0, %v466
  %v468 = vpop.f32.mrb[0].mxu0
  %v469 = vpop.f32.mrb[0].mxu0
  %v470 = vadd.f32 0.0, %v469
  %v471 = vpop.f32.mrb[0].mxu0
  %472 = vmatprep.mubr.bf16.mxu0 %v251
  %473 = vmatmul.mubr.bf16.gmra.mrb[0].mxu0 %v250
  %v474 = vpop.f32.mrb[0].mxu0
  %v475 = vadd.f32 0.0, %v474
  %v476 = vpop.f32.mrb[0].mxu0
  %v477 = vpop.f32.mrb[0].mxu0
  %v478 = vadd.f32 0.0, %v477
  %v479 = vpop.f32.mrb[0].mxu0
  %480 = vmatprep.mubr.bf16.mxu0 %v253
  %481 = vmatmul.mubr.bf16.gmra.mrb[0].mxu0 %v252
  %v482 = vpop.f32.mrb[0].mxu0
  %v483 = vadd.f32 0.0, %v482
  %v484 = vpop.f32.mrb[0].mxu0
  %v485 = vpop.f32.mrb[0].mxu0
  %v486 = vadd.f32 0.0, %v485
  %v487 = vpop.f32.mrb[0].mxu0
  %488 = vmatprep.mubr.bf16.mxu0 %v255
  %489 = vmatmul.mubr.bf16.gmra.mrb[0].mxu0 %v254
  %v490 = vpop.f32.mrb[0].mxu0
  %v491 = vadd.f32 0.0, %v490
  %v492 = vpop.f32.mrb[0].mxu0
  %v493 = vpop.f32.mrb[0].mxu0
  %v494 = vadd.f32 0.0, %v493
  %v495 = vpop.f32.mrb[0].mxu0
  %496 = vmatprep.mubr.bf16.mxu0 %v257
  %497 = vmatmul.mubr.bf16.gmra.mrb[0].mxu0 %v256
  %v498 = vpop.f32.mrb[0].mxu0
  %v499 = vadd.f32 0.0, %v498
  %v500 = vpop.f32.mrb[0].mxu0
  %v501 = vpop.f32.mrb[0].mxu0
  %v502 = vadd.f32 0.0, %v501
  %v503 = vpop.f32.mrb[0].mxu0
  %504 = vmatprep.mubr.bf16.mxu0 %v259
  %505 = vmatmul.mubr.bf16.gmra.mrb[0].mxu0 %v258
  %v506 = vpop.f32.mrb[0].mxu0
  %v507 = vadd.f32 0.0, %v506
  %v508 = vpop.f32.mrb[0].mxu0
  %v509 = vpop.f32.mrb[0].mxu0
  %v510 = vadd.f32 0.0, %v509
  %v511 = vpop.f32.mrb[0].mxu0
  %512 = vmatprep.mubr.bf16.mxu0 %v261
  %513 = vmatmul.mubr.bf16.gmra.mrb[0].mxu0 %v260
  %v514 = vpop.f32.mrb[0].mxu0
  %v515 = vadd.f32 0.0, %v514
  %v516 = vpop.f32.mrb[0].mxu0
  %v517 = vpop.f32.mrb[0].mxu0
  %v518 = vadd.f32 0.0, %v517
  %v519 = vpop.f32.mrb[0].mxu0
  %520 = vmatprep.mubr.bf16.mxu0 %v263
  %521 = vmatmul.mubr.bf16.gmra.mrb[0].mxu0 %v262
  %v522 = vpop.f32.mrb[0].mxu0
  %v523 = vadd.f32 0.0, %v522
  %v524 = vpop.f32.mrb[0].mxu0
  %v525 = vpop.f32.mrb[0].mxu0
  %v526 = vadd.f32 0.0, %v525
  %v527 = vpop.f32.mrb[0].mxu0
  %528 = vmatprep.mubr.bf16.mxu0 %v265
  %529 = vmatmul.mubr.bf16.gmra.mrb[0].mxu0 %v264
  %v530 = vpop.f32.mrb[0].mxu0
  %v531 = vadd.f32 0.0, %v530
  %v532 = vpop.f32.mrb[0].mxu0
  %v533 = vpop.f32.mrb[0].mxu0
  %v534 = vadd.f32 0.0, %v533
  %v535 = vpop.f32.mrb[0].mxu0
  %536 = vmatprep.mubr.bf16.mxu0 %v267
  %537 = vmatmul.mubr.bf16.gmra.mrb[0].mxu0 %v266
  %v538 = vpop.f32.mrb[0].mxu0
  %v539 = vadd.f32 0.0, %v538
  %v540 = vpop.f32.mrb[0].mxu0
  %v541 = vpop.f32.mrb[0].mxu0
  %v542 = vadd.f32 0.0, %v541
  %v543 = vpop.f32.mrb[0].mxu0
  %544 = vmatprep.mubr.bf16.mxu0 %v269
  %545 = vmatmul.mubr.bf16.gmra.mrb[0].mxu0 %v268
  %v546 = vpop.f32.mrb[0].mxu0
  %v547 = vadd.f32 0.0, %v546
  %v548 = vpop.f32.mrb[0].mxu0
  %v549 = vpop.f32.mrb[0].mxu0
  %v550 = vadd.f32 0.0, %v549
  %v551 = vpop.f32.mrb[0].mxu0
  %552 = vmatprep.mubr.bf16.mxu0 %v271
  %553 = vmatmul.mubr.bf16.gmra.mrb[0].mxu0 %v270
  %v554 = vpop.f32.mrb[0].mxu0
  %v555 = vadd.f32 0.0, %v554
  %v556 = vpop.f32.mrb[0].mxu0
  %v557 = vpop.f32.mrb[0].mxu0
  %v558 = vadd.f32 0.0, %v557
  %v559 = vpop.f32.mrb[0].mxu0
  %560 = vdwg.mxu0
  %v561 = vadd.f32 %v48, %v435
  %v562 = vadd.f32 %v49, %v438
  %v563 = vadd.f32 %v50, %v443
  %v564 = vadd.f32 %v51, %v446
  %v565 = vadd.f32 %v52, %v451
  %v566 = vadd.f32 %v53, %v454
  %v567 = vadd.f32 %v54, %v459
  %v568 = vadd.f32 %v55, %v462
  %v569 = vadd.f32 %v56, %v467
  %v570 = vadd.f32 %v57, %v470
  %v571 = vadd.f32 %v58, %v475
  %v572 = vadd.f32 %v59, %v478
  %v573 = vadd.f32 %v60, %v483
  %v574 = vadd.f32 %v61, %v486
  %v575 = vadd.f32 %v62, %v491
  %v576 = vadd.f32 %v63, %v494
  %v577 = vadd.f32 %v64, %v499
  %v578 = vadd.f32 %v65, %v502
  %v579 = vadd.f32 %v66, %v507
  %v580 = vadd.f32 %v67, %v510
  %v581 = vadd.f32 %v68, %v515
  %v582 = vadd.f32 %v69, %v518
  %v583 = vadd.f32 %v70, %v523
  %v584 = vadd.f32 %v71, %v526
  %v585 = vadd.f32 %v72, %v531
  %v586 = vadd.f32 %v73, %v534
  %v587 = vadd.f32 %v74, %v539
  %v588 = vadd.f32 %v75, %v542
  %v589 = vadd.f32 %v76, %v547
  %v590 = vadd.f32 %v77, %v550
  %v591 = vadd.f32 %v78, %v555
  %v592 = vadd.f32 %v79, %v558
  %593 = vst [vmem:[#allocation2] sm:$0xff] %v561
  %594 = vst [vmem:[#allocation2 + $0x8] sm:$0xff] %v562
  %595 = vst [vmem:[#allocation2 + $0x10] sm:$0xff] %v563
  %596 = vst [vmem:[#allocation2 + $0x18] sm:$0xff] %v564
  %597 = vst [vmem:[#allocation2 + $0x20] sm:$0xff] %v565
  %598 = vst [vmem:[#allocation2 + $0x28] sm:$0xff] %v566
  %599 = vst [vmem:[#allocation2 + $0x30] sm:$0xff] %v567
  %600 = vst [vmem:[#allocation2 + $0x38] sm:$0xff] %v568
  %601 = vst [vmem:[#allocation2 + $0x40] sm:$0xff] %v569
  %602 = vst [vmem:[#allocation2 + $0x48] sm:$0xff] %v570
  %603 = vst [vmem:[#allocation2 + $0x50] sm:$0xff] %v571
  %604 = vst [vmem:[#allocation2 + $0x58] sm:$0xff] %v572
  %605 = vst [vmem:[#allocation2 + $0x60] sm:$0xff] %v573
  %606 = vst [vmem:[#allocation2 + $0x68] sm:$0xff] %v574
  %607 = vst [vmem:[#allocation2 + $0x70] sm:$0xff] %v575
  %608 = vst [vmem:[#allocation2 + $0x78] sm:$0xff] %v576
  %609 = vst [vmem:[#allocation2 + $0x80] sm:$0xff] %v577
  %610 = vst [vmem:[#allocation2 + $0x88] sm:$0xff] %v578
  %611 = vst [vmem:[#allocation2 + $0x90] sm:$0xff] %v579
  %612 = vst [vmem:[#allocation2 + $0x98] sm:$0xff] %v580
  %613 = vst [vmem:[#allocation2 + $0xa0] sm:$0xff] %v581
  %614 = vst [vmem:[#allocation2 + $0xa8] sm:$0xff] %v582
  %615 = vst [vmem:[#allocation2 + $0xb0] sm:$0xff] %v583
  %616 = vst [vmem:[#allocation2 + $0xb8] sm:$0xff] %v584
  %617 = vst [vmem:[#allocation2 + $0xc0] sm:$0xff] %v585
  %618 = vst [vmem:[#allocation2 + $0xc8] sm:$0xff] %v586
  %619 = vst [vmem:[#allocation2 + $0xd0] sm:$0xff] %v587
  %620 = vst [vmem:[#allocation2 + $0xd8] sm:$0xff] %v588
  %621 = vst [vmem:[#allocation2 + $0xe0] sm:$0xff] %v589
  %622 = vst [vmem:[#allocation2 + $0xe8] sm:$0xff] %v590
  %623 = vst [vmem:[#allocation2 + $0xf0] sm:$0xff] %v591
  %624 = vst [vmem:[#allocation2 + $0xf8] sm:$0xff] %v592
  // Predicated region
  $region14: #{_pallas_matmul_nobias.1} parent=0 // pred_check
    %p625 = pneg %p12
  $region15: #{_pallas_matmul_nobias.1} parent=0 // pred_check_branch
    %627 = sbr.rel (%p625) target = $region17
  $region16: #{_pallas_matmul_nobias.1} parent=0 // pred_region
    %v628 = vld [vmem:[#allocation2] sm:$0xff]
    %v629 = vld [vmem:[#allocation2 + $0x8] sm:$0xff]
    %v630 = vld [vmem:[#allocation2 + $0x10] sm:$0xff]
    %v631 = vld [vmem:[#allocation2 + $0x18] sm:$0xff]
    %v632 = vld [vmem:[#allocation2 + $0x20] sm:$0xff]
    %v633 = vld [vmem:[#allocation2 + $0x28] sm:$0xff]
    %v634 = vld [vmem:[#allocation2 + $0x30] sm:$0xff]
    %v635 = vld [vmem:[#allocation2 + $0x38] sm:$0xff]
    %v636 = vld [vmem:[#allocation2 + $0x40] sm:$0xff]
    %v637 = vld [vmem:[#allocation2 + $0x48] sm:$0xff]
    %v638 = vld [vmem:[#allocation2 + $0x50] sm:$0xff]
    %v639 = vld [vmem:[#allocation2 + $0x58] sm:$0xff]
    %v640 = vld [vmem:[#allocation2 + $0x60] sm:$0xff]
    %v641 = vld [vmem:[#allocation2 + $0x68] sm:$0xff]
    %v642 = vld [vmem:[#allocation2 + $0x70] sm:$0xff]
    %v643 = vld [vmem:[#allocation2 + $0x78] sm:$0xff]
    %v644 = vld [vmem:[#allocation2 + $0x80] sm:$0xff]
    %v645 = vld [vmem:[#allocation2 + $0x88] sm:$0xff]
    %v646 = vld [vmem:[#allocation2 + $0x90] sm:$0xff]
    %v647 = vld [vmem:[#allocation2 + $0x98] sm:$0xff]
    %v648 = vld [vmem:[#allocation2 + $0xa0] sm:$0xff]
    %v649 = vld [vmem:[#allocation2 + $0xa8] sm:$0xff]
    %v650 = vld [vmem:[#allocation2 + $0xb0] sm:$0xff]
    %v651 = vld [vmem:[#allocation2 + $0xb8] sm:$0xff]
    %v652 = vld [vmem:[#allocation2 + $0xc0] sm:$0xff]
    %v653 = vld [vmem:[#allocation2 + $0xc8] sm:$0xff]
    %v654 = vld [vmem:[#allocation2 + $0xd0] sm:$0xff]
    %v655 = vld [vmem:[#allocation2 + $0xd8] sm:$0xff]
    %v656 = vld [vmem:[#allocation2 + $0xe0] sm:$0xff]
    %v657 = vld [vmem:[#allocation2 + $0xe8] sm:$0xff]
    %v658 = vld [vmem:[#allocation2 + $0xf0] sm:$0xff]
    %v659 = vld [vmem:[#allocation2 + $0xf8] sm:$0xff]
    %660 = vst [vmem:[%s2] sm:$0xff] %v628
    %661 = vst [vmem:[%s2 + $0x8] sm:$0xff] %v629
    %662 = vst [vmem:[%s2 + $0x10] sm:$0xff] %v630
    %663 = vst [vmem:[%s2 + $0x18] sm:$0xff] %v631
    %664 = vst [vmem:[%s2 + $0x20] sm:$0xff] %v632
    %665 = vst [vmem:[%s2 + $0x28] sm:$0xff] %v633
    %666 = vst [vmem:[%s2 + $0x30] sm:$0xff] %v634
    %667 = vst [vmem:[%s2 + $0x38] sm:$0xff] %v635
    %668 = vst [vmem:[%s2 + $0x40] sm:$0xff] %v636
    %669 = vst [vmem:[%s2 + $0x48] sm:$0xff] %v637
    %670 = vst [vmem:[%s2 + $0x50] sm:$0xff] %v638
    %671 = vst [vmem:[%s2 + $0x58] sm:$0xff] %v639
    %672 = vst [vmem:[%s2 + $0x60] sm:$0xff] %v640
    %673 = vst [vmem:[%s2 + $0x68] sm:$0xff] %v641
    %674 = vst [vmem:[%s2 + $0x70] sm:$0xff] %v642
    %675 = vst [vmem:[%s2 + $0x78] sm:$0xff] %v643
    %676 = vst [vmem:[%s2 + $0x80] sm:$0xff] %v644
    %677 = vst [vmem:[%s2 + $0x88] sm:$0xff] %v645
    %678 = vst [vmem:[%s2 + $0x90] sm:$0xff] %v646
    %679 = vst [vmem:[%s2 + $0x98] sm:$0xff] %v647
    %680 = vst [vmem:[%s2 + $0xa0] sm:$0xff] %v648
    %681 = vst [vmem:[%s2 + $0xa8] sm:$0xff] %v649
    %682 = vst [vmem:[%s2 + $0xb0] sm:$0xff] %v650
    %683 = vst [vmem:[%s2 + $0xb8] sm:$0xff] %v651
    %684 = vst [vmem:[%s2 + $0xc0] sm:$0xff] %v652
    %685 = vst [vmem:[%s2 + $0xc8] sm:$0xff] %v653
    %686 = vst [vmem:[%s2 + $0xd0] sm:$0xff] %v654
    %687 = vst [vmem:[%s2 + $0xd8] sm:$0xff] %v655
    %688 = vst [vmem:[%s2 + $0xe0] sm:$0xff] %v656
    %689 = vst [vmem:[%s2 + $0xe8] sm:$0xff] %v657
    %690 = vst [vmem:[%s2 + $0xf0] sm:$0xff] %v658
    %691 = vst [vmem:[%s2 + $0xf8] sm:$0xff] %v659
  $region17: #{_pallas_matmul_nobias.1} parent=0 // pred_fallthru
    _
  // Predicated region
  $region18: #{_pallas_matmul_nobias.1} parent=0 // pred_check
    _
  $region19: #{_pallas_matmul_nobias.1} parent=0 // pred_check_branch
    %693 = sbr.rel (0) target = $region21
  $region20: #{_pallas_matmul_nobias.1} parent=0 // pred_region
    _
  $region21: #{_pallas_matmul_nobias.1} parent=0 // pred_fallthru
    _
  // Predicated region
  $region22: #{_pallas_matmul_nobias.1} parent=0 // pred_check
    _
  $region23: #{_pallas_matmul_nobias.1} parent=0 // pred_check_branch
    %695 = sbr.rel (0) target = $region25
  $region24: #{_pallas_matmul_nobias.1} parent=0 // pred_region
    _
  $region25: #{_pallas_matmul_nobias.1} parent=0 // pred_fallthru
    _

</llo_original>
